<compile_context>
chip_gen: v5e
topology: v5e:2x2
jax: 0.10.0
libtpu: 0.0.40
codegen_flags: <defaults>
</compile_context>

<pallas_src>
import functools
import math

import jax
import jax.numpy as jnp
from jax.experimental import pallas as pl
from jax.experimental.pallas import tpu as pltpu


def _round_up(x, m):
    return ((x + m - 1) // m) * m


def _nbytes(shape, dtype):
    return math.prod(shape) * jnp.dtype(dtype).itemsize


def _vmem_capacity_bytes():
    try:
        return int(pltpu.get_tpu_info().vmem_capacity_bytes)
    except Exception:
        return 64 << 20  # conservative default (v7x per-TC VMEM)


# --------------------------- kernel bodies ----------------------------------


def _mlp_resident_kernel(x_ref, w1_ref, b1_ref, w2_ref, b2_ref, o_ref, *,
                         compute_dtype):
    """Full W1/W2 resident in VMEM; grid iterates batch tiles only."""
    xb = x_ref[...].astype(compute_dtype)
    hid = jnp.dot(xb, w1_ref[...], preferred_element_type=jnp.float32)
    hid = jnp.maximum(hid + b1_ref[...].astype(jnp.float32), 0.0)
    out = jnp.dot(hid.astype(compute_dtype), w2_ref[...],
                  preferred_element_type=jnp.float32)
    o_ref[...] = (out + b2_ref[...].astype(jnp.float32)).astype(o_ref.dtype)


def _mlp_streamed_kernel(x_ref, w1_ref, b1_ref, w2_ref, b2_ref, o_ref, *scratch,
                         compute_dtype):
    """Hidden dim streamed as the last grid axis with a resident f32 accumulator."""
    # For f32 outputs the (resident) output block doubles as the accumulator.
    acc_ref = scratch[0] if scratch else o_ref
    h = pl.program_id(1)

    @pl.when(h == 0)
    def _():
        acc_ref[...] = jnp.zeros_like(acc_ref)

    xb = x_ref[...].astype(compute_dtype)
    hid = jnp.dot(xb, w1_ref[...], preferred_element_type=jnp.float32)
    hid = jnp.maximum(hid + b1_ref[...].astype(jnp.float32), 0.0)
    acc_ref[...] += jnp.dot(hid.astype(compute_dtype), w2_ref[...],
                            preferred_element_type=jnp.float32)

    @pl.when(h == pl.num_programs(1) - 1)
    def _():
        o_ref[...] = (acc_ref[...] + b2_ref[...].astype(jnp.float32)).astype(o_ref.dtype)


# ------------------------------ wrapper --------------------------------------


@functools.partial(jax.jit, static_argnames=("tb", "th", "force_streamed"))
def qnetwork_forward(x, w1, b1, w2, b2, *, tb=512, th=512, force_streamed=False):
    """x:(B,D); w1:(D,H); b1:(H,) or (1,H); w2:(H,A); b2:(A,) or (1,A).

    Weights may be f32 (exact) or bf16 (recommended: bf16 MXU + half the HBM
    weight traffic; accumulation stays f32)."""
    if b1.ndim == 1:
        b1 = b1[None, :]
    if b2.ndim == 1:
        b2 = b2[None, :]

    B, D = x.shape
    H = w1.shape[1]
    A = w2.shape[1]
    out_dtype = x.dtype
    wdt = w1.dtype
    compute_dtype = jnp.bfloat16 if wdt == jnp.bfloat16 else jnp.float32

    # --- pad feature dims to lane multiples (aligned, unmasked MXU passes) ---
    Dp, Hp, Ap = _round_up(D, 128), _round_up(H, 128), _round_up(A, 128)
    if Dp != D:
        x = jnp.pad(x, ((0, 0), (0, Dp - D)))
        w1 = jnp.pad(w1, ((0, Dp - D), (0, 0)))
    if Hp != H:
        w1 = jnp.pad(w1, ((0, 0), (0, Hp - H)))
        b1 = jnp.pad(b1, ((0, 0), (0, Hp - H)))
        w2 = jnp.pad(w2, ((0, Hp - H), (0, 0)))
    if Ap != A:
        w2 = jnp.pad(w2, ((0, 0), (0, Ap - A)))
        b2 = jnp.pad(b2, ((0, 0), (0, Ap - A)))

    # --- batch tile (multiple of 8) ---
    tb_eff = max(8, min(_round_up(tb, 8), _round_up(B, 8)))

    # --- size everything from the actual chip's VMEM (generation-safe) ---
    capacity = _vmem_capacity_bytes()
    usable = max(capacity - (8 << 20), 24 << 20)
    headroom = 2 << 20

    def resident_need(tb_):
        return (2 * (_nbytes((tb_, Dp), x.dtype) + _nbytes((Dp, Hp), wdt)
                     + _nbytes((1, Hp), b1.dtype) + _nbytes((Hp, Ap), wdt)
                     + _nbytes((1, Ap), b2.dtype) + _nbytes((tb_, Ap), out_dtype))
                + _nbytes((tb_, Hp), jnp.float32)      # hidden intermediate
                + headroom)

    def streamed_need(tb_, th_):
        acc = 0 if out_dtype == jnp.float32 else _nbytes((tb_, Ap), jnp.float32)
        return (2 * (_nbytes((tb_, Dp), x.dtype) + _nbytes((Dp, th_), wdt)
                     + _nbytes((1, th_), b1.dtype) + _nbytes((th_, Ap), wdt)
                     + _nbytes((1, Ap), b2.dtype) + _nbytes((tb_, Ap), out_dtype))
                + acc + _nbytes((tb_, th_), jnp.float32)
                + headroom)

    use_resident = (not force_streamed) and resident_need(tb_eff) <= usable

    if use_resident:
        need = resident_need(tb_eff)
        th_eff = Hp  # unused
    else:
        th_req = max(128, min((min(th, Hp) // 128) * 128, Hp))
        tb_try, chosen = tb_eff, None
        while chosen is None:
            for cand in range(th_req, 127, -128):
                if Hp % cand == 0 and streamed_need(tb_try, cand) <= usable:
                    chosen = (tb_try, cand)
                    break
            if chosen is None:
                if tb_try <= 8:
                    chosen = (8, 128)  # smallest config; let the compiler cope
                else:
                    tb_try = max(8, _round_up(tb_try // 2, 8))
        tb_eff, th_eff = chosen
        need = streamed_need(tb_eff, th_eff)

    # --- pad batch so the grid divides evenly ---
    Bp = _round_up(B, tb_eff)
    if Bp != B:
        x = jnp.pad(x, ((0, Bp - B), (0, 0)))

    vmem_limit = int(min(max(need + (4 << 20), 32 << 20),
                         max(capacity - (4 << 20), 32 << 20)))

    if use_resident:
        kernel = functools.partial(_mlp_resident_kernel, compute_dtype=compute_dtype)
        grid_spec = pltpu.PrefetchScalarGridSpec(
            num_scalar_prefetch=0,
            grid=(Bp // tb_eff,),
            in_specs=[
                pl.BlockSpec((tb_eff, Dp), lambda i: (i, 0)),   # x batch tile
                pl.BlockSpec((Dp, Hp), lambda i: (0, 0)),       # W1 (fetched once)
                pl.BlockSpec((1, Hp), lambda i: (0, 0)),        # b1
                pl.BlockSpec((Hp, Ap), lambda i: (0, 0)),       # W2 (fetched once)
                pl.BlockSpec((1, Ap), lambda i: (0, 0)),        # b2
            ],
            out_specs=pl.BlockSpec((tb_eff, Ap), lambda i: (i, 0)),
            scratch_shapes=(),
        )
        dims = ("parallel",)
    else:
        kernel = functools.partial(_mlp_streamed_kernel, compute_dtype=compute_dtype)
        scratch = (() if out_dtype == jnp.float32
                   else (pltpu.VMEM((tb_eff, Ap), jnp.float32),))
        grid_spec = pltpu.PrefetchScalarGridSpec(
            num_scalar_prefetch=0,
            grid=(Bp // tb_eff, Hp // th_eff),
            in_specs=[
                pl.BlockSpec((tb_eff, Dp), lambda i, h: (i, 0)),   # x (resident over h)
                pl.BlockSpec((Dp, th_eff), lambda i, h: (0, h)),   # W1 chunk (streamed)
                pl.BlockSpec((1, th_eff), lambda i, h: (0, h)),    # b1 chunk
                pl.BlockSpec((th_eff, Ap), lambda i, h: (h, 0)),   # W2 chunk (streamed)
                pl.BlockSpec((1, Ap), lambda i, h: (0, 0)),        # b2 (finalize only)
            ],
            out_specs=pl.BlockSpec((tb_eff, Ap), lambda i, h: (i, 0)),
            scratch_shapes=scratch,
        )
        dims = ("parallel", "arbitrary")

    out = pl.pallas_call(
        kernel,
        out_shape=jax.ShapeDtypeStruct((Bp, Ap), out_dtype),
        grid_spec=grid_spec,
        compiler_params=pltpu.CompilerParams(
            dimension_semantics=dims,
            vmem_limit_bytes=vmem_limit,
        ),
    )(x, w1, b1, w2, b2)

    if Bp != B or Ap != A:
        out = out[:B, :A]
    return out


# --------------------------- init / reference --------------------------------


def init_qnetwork_params(key, obs_dim, hidden_dim, act_dim, dtype=jnp.float32):
    """PyTorch-style uniform(-1/sqrt(fan_in), 1/sqrt(fan_in)) init (W stored (in, out))."""
    k1, k2, k3, k4 = jax.random.split(key, 4)
    bound1 = 1.0 / jnp.sqrt(obs_dim)
    bound2 = 1.0 / jnp.sqrt(hidden_dim)
    w1 = jax.random.uniform(k1, (obs_dim, hidden_dim), dtype, -bound1, bound1)
    b1 = jax.random.uniform(k2, (1, hidden_dim), dtype, -bound1, bound1)
    w2 = jax.random.uniform(k3, (hidden_dim, act_dim), dtype, -bound2, bound2)
    b2 = jax.random.uniform(k4, (1, act_dim), dtype, -bound2, bound2)
    return w1, b1, w2, b2


def qnetwork_reference(x, w1, b1, w2, b2):
    hp = jax.lax.Precision.HIGHEST
    h = jnp.maximum(jnp.dot(x, w1, precision=hp) + b1, 0.0)
    return jnp.dot(h, w2, precision=hp) + b2


if __name__ == "__main__":
    # Small shapes consistent with Linear -> ReLU -> Linear (real defaults are
    # obs_dim=3764, hidden=2048, act_dim=2048). Odd batch / obs_dim exercise
    # the padding paths.
    batch, obs_dim, hidden_dim, act_dim = 12, 500, 256, 128

    key = jax.random.PRNGKey(0)
    kx, kp = jax.random.split(key)
    x = jax.random.normal(kx, (batch, obs_dim), jnp.float32)
    w1, b1, w2, b2 = init_qnetwork_params(kp, obs_dim, hidden_dim, act_dim)
    ref = qnetwork_reference(x, w1, b1, w2, b2)

    # 1) f32 weights, auto path (weights fully VMEM-resident at these shapes).
    out = jax.block_until_ready(qnetwork_forward(x, w1, b1, w2, b2))
    assert out.shape == (batch, act_dim)
    assert jnp.allclose(out, ref, atol=2e-3, rtol=2e-3), "f32 resident path mismatch"

    # 2) f32 weights, forced hidden-streamed path (exercises the accumulator).
    out_s = jax.block_until_ready(
        qnetwork_forward(x, w1, b1, w2, b2, th=128, force_streamed=True))
    assert jnp.allclose(out_s, ref, atol=2e-3, rtol=2e-3), "f32 streamed path mismatch"

    # 3) bf16 weights (recommended production path): bf16 MXU, f32 accumulation.
    wb = tuple(a.astype(jnp.bfloat16) for a in (w1, b1, w2, b2))
    out_bf = jax.block_until_ready(qnetwork_forward(x, *wb))
    assert out_bf.shape == (batch, act_dim)
    assert jnp.allclose(out_bf, ref, atol=5e-2, rtol=5e-2), "bf16 resident path mismatch"

    out_bf_s = jax.block_until_ready(
        qnetwork_forward(x, *wb, th=128, force_streamed=True))
    assert jnp.allclose(out_bf_s, ref, atol=5e-2, rtol=5e-2), "bf16 streamed path mismatch"

    print("KERNEL_OK")
</pallas_src>

<mosaic_0001>
module attributes {stable_mosaic.version = 11 : i64} {
  func.func @_mlp_resident_kernel(%arg0: i32, %arg1: memref<16x512xf32, #tpu.memory_space<vmem>>, %arg2: memref<512x256xf32, #tpu.memory_space<vmem>>, %arg3: memref<1x256xf32, #tpu.memory_space<vmem>>, %arg4: memref<256x128xf32, #tpu.memory_space<vmem>>, %arg5: memref<1x128xf32, #tpu.memory_space<vmem>>, %arg6: memref<16x128xf32, #tpu.memory_space<vmem>>) attributes {dimension_semantics = [#tpu.dimension_semantics<parallel>], iteration_bounds = array<i64: 1>, scalar_prefetch = 0 : i64, scratch_operands = 0 : i64, tpu.core_type = #tpu.core_type<tc>, window_params = [{transform_indices = @transform_0, window_bounds = array<i64: 16, 512>}, {pipeline_mode = #tpu.pipeline_mode<synchronous>, transform_indices = @transform_1, window_bounds = array<i64: 512, 256>}, {pipeline_mode = #tpu.pipeline_mode<synchronous>, transform_indices = @transform_2, window_bounds = array<i64: 1, 256>}, {pipeline_mode = #tpu.pipeline_mode<synchronous>, transform_indices = @transform_3, window_bounds = array<i64: 256, 128>}, {pipeline_mode = #tpu.pipeline_mode<synchronous>, transform_indices = @transform_4, window_bounds = array<i64: 1, 128>}, {transform_indices = @transform_5, window_bounds = array<i64: 16, 128>}]} {
    %c0 = arith.constant 0 : index
    %c0_0 = arith.constant 0 : index
    %0 = vector.load %arg1[%c0, %c0_0] : memref<16x512xf32, #tpu.memory_space<vmem>>, vector<16x512xf32>
    %c0_1 = arith.constant 0 : index
    %c0_2 = arith.constant 0 : index
    %1 = vector.load %arg2[%c0_1, %c0_2] : memref<512x256xf32, #tpu.memory_space<vmem>>, vector<512x256xf32>
    %cst = arith.constant dense<0.000000e+00> : vector<16x256xf32>
    %2 = tpu.matmul %0, %1, %cst {dimension_numbers = #tpu.dot_dimension_numbers<[1], [0], [0], [1], [0, 0, 1, 1], [], []>} : vector<16x512xf32>, vector<512x256xf32>, vector<16x256xf32> -> vector<16x256xf32>
    %c0_3 = arith.constant 0 : index
    %c0_4 = arith.constant 0 : index
    %3 = vector.load %arg3[%c0_3, %c0_4] : memref<1x256xf32, #tpu.memory_space<vmem>>, vector<1x256xf32>
    %4 = vector.broadcast %3 : vector<1x256xf32> to vector<16x256xf32>
    %5 = arith.addf %2, %4 : vector<16x256xf32>
    %cst_5 = arith.constant 0.000000e+00 : f32
    %6 = vector.broadcast %cst_5 : f32 to vector<16x256xf32>
    %7 = arith.maximumf %5, %6 : vector<16x256xf32>
    %c0_6 = arith.constant 0 : index
    %c0_7 = arith.constant 0 : index
    %8 = vector.load %arg4[%c0_6, %c0_7] : memref<256x128xf32, #tpu.memory_space<vmem>>, vector<256x128xf32>
    %cst_8 = arith.constant dense<0.000000e+00> : vector<16x128xf32>
    %9 = tpu.matmul %7, %8, %cst_8 {dimension_numbers = #tpu.dot_dimension_numbers<[1], [0], [0], [1], [0, 0, 1, 1], [], []>} : vector<16x256xf32>, vector<256x128xf32>, vector<16x128xf32> -> vector<16x128xf32>
    %c0_9 = arith.constant 0 : index
    %c0_10 = arith.constant 0 : index
    %10 = vector.load %arg5[%c0_9, %c0_10] : memref<1x128xf32, #tpu.memory_space<vmem>>, vector<1x128xf32>
    %11 = vector.broadcast %10 : vector<1x128xf32> to vector<16x128xf32>
    %12 = arith.addf %9, %11 : vector<16x128xf32>
    %c0_11 = arith.constant 0 : index
    %c0_12 = arith.constant 0 : index
    %13 = vector.load %arg6[%c0_11, %c0_12] : memref<16x128xf32, #tpu.memory_space<vmem>>, vector<16x128xf32>
    tpu.vector_store %arg6[%c0_11, %c0_12], %12 {strides = array<i32>} : memref<16x128xf32, #tpu.memory_space<vmem>>, vector<16x128xf32>,
    return
  }
  func.func @transform_0(%arg0: i32) -> (i32, i32) {
    %c0_i32 = arith.constant 0 : i32
    %c0_i32_0 = arith.constant 0 : i32
    return %arg0, %c0_i32 : i32, i32
  }
  func.func @transform_1(%arg0: i32) -> (i32, i32) {
    %c0_i32 = arith.constant 0 : i32
    %c0_i32_0 = arith.constant 0 : i32
    %c0_i32_1 = arith.constant 0 : i32
    return %c0_i32, %c0_i32_0 : i32, i32
  }
  func.func @transform_2(%arg0: i32) -> (i32, i32) {
    %c0_i32 = arith.constant 0 : i32
    %c0_i32_0 = arith.constant 0 : i32
    %c0_i32_1 = arith.constant 0 : i32
    return %c0_i32, %c0_i32_0 : i32, i32
  }
  func.func @transform_3(%arg0: i32) -> (i32, i32) {
    %c0_i32 = arith.constant 0 : i32
    %c0_i32_0 = arith.constant 0 : i32
    %c0_i32_1 = arith.constant 0 : i32
    return %c0_i32, %c0_i32_0 : i32, i32
  }
  func.func @transform_4(%arg0: i32) -> (i32, i32) {
    %c0_i32 = arith.constant 0 : i32
    %c0_i32_0 = arith.constant 0 : i32
    %c0_i32_1 = arith.constant 0 : i32
    return %c0_i32, %c0_i32_0 : i32, i32
  }
  func.func @transform_5(%arg0: i32) -> (i32, i32) {
    %c0_i32 = arith.constant 0 : i32
    %c0_i32_0 = arith.constant 0 : i32
    return %arg0, %c0_i32 : i32, i32
  }
}

</mosaic_0001>

<llo_original>
// kernel: qnetwork_forward.1
$region0: #{qnetwork_forward.1}
  #allocation0 [shape = 'u32[]', space=smem, size = 0x4, offset = 0x4, fixed_abs, tag = 'smem constant byte address 0x4 - core index']
  #allocation1 [shape = 'u32[72,128]{1,0:T(1,128)}', space=vmem, size = 0x9000, scoped, tag = 'internal scratch']
  %s0 = inlined_call_operand.vmem [shape: f32[16,512], index: 0, kind: input, shape index: {}]
  %s1 = inlined_call_operand.vmem [shape: f32[512,256], index: 1, kind: input, shape index: {}]
  %s2 = inlined_call_operand.vmem [shape: f32[1,256], index: 2, kind: input, shape index: {}]
  %s3 = inlined_call_operand.vmem [shape: f32[256,128], index: 3, kind: input, shape index: {}]
  %s4 = inlined_call_operand.vmem [shape: f32[1,128], index: 4, kind: input, shape index: {}]
  %s5 = inlined_call_operand.hbm [shape: f32[16,128], index: 5, kind: output, shape index: {}]
  %s6 = sld [smem:[#allocation0]]
  $region30: #{qnetwork_forward.1} parent=0
    _
  %s8 = ssub.s32 1, %s6
  %s9 = scalar_select 0, %s8, %s6
  $region1: #{qnetwork_forward.1} parent=0
    #allocation2 [shape = 'u8[8192]{0}', space=vmem, size = 0x2000, scoped, tag = 'output window, operand 0, single buffered']
    #allocation3 [shape = 's32[1]{0}', space=sflag, size = 0x4, scoped, tag = 'scoped memory for qnetwork_forward.1']
    %10 = vsyncpa [#allocation3], 0
    // Predicated region
    $region2: #{qnetwork_forward.1} parent=1 // pred_check
      _
    $region3: #{qnetwork_forward.1} parent=1 // pred_check_branch
      %12 = sbr.rel (0) target = $region5
    $region4: #{qnetwork_forward.1} parent=1 // pred_region
      _
    $region5: #{qnetwork_forward.1} parent=1 // pred_fallthru
      _
    // Predicated region
    $region6: #{qnetwork_forward.1} parent=1 // pred_check
      _
    $region7: #{qnetwork_forward.1} parent=1 // pred_check_branch
      %14 = sbr.rel (0) target = $region9
    $region8: #{qnetwork_forward.1} parent=1 // pred_region
      _
    $region9: #{qnetwork_forward.1} parent=1 // pred_fallthru
      _
    // Predicated region
    $region10: #{qnetwork_forward.1} parent=1 // pred_check
      _
    $region11: #{qnetwork_forward.1} parent=1 // pred_check_branch
      %16 = sbr.rel (0) target = $region13
    $region12: #{qnetwork_forward.1} parent=1 // pred_region
      _
    $region13: #{qnetwork_forward.1} parent=1 // pred_fallthru
      _
    // Predicated region
    $region14: #{qnetwork_forward.1} parent=1 // pred_check
      _
    $region15: #{qnetwork_forward.1} parent=1 // pred_check_branch
      %18 = sbr.rel (0) target = $region17
    $region16: #{qnetwork_forward.1} parent=1 // pred_region
      _
    $region17: #{qnetwork_forward.1} parent=1 // pred_fallthru
      _
    // Predicated region
    $region18: #{qnetwork_forward.1} parent=1 // pred_check
      _
    $region19: #{qnetwork_forward.1} parent=1 // pred_check_branch
      %20 = sbr.rel (0) target = $region21
    $region20: #{qnetwork_forward.1} parent=1 // pred_region
      _
    $region21: #{qnetwork_forward.1} parent=1 // pred_fallthru
      _
    %v21 = vld [vmem:[%s0] sm:$0xff]
    %v22 = vld [vmem:[%s0 + $0x8] sm:$0xff]
    %v23 = vld [vmem:[%s0 + $0x10] sm:$0xff]
    %v24 = vld [vmem:[%s0 + $0x18] sm:$0xff]
    %v25 = vld [vmem:[%s0 + $0x20] sm:$0xff]
    %v26 = vld [vmem:[%s0 + $0x28] sm:$0xff]
    %v27 = vld [vmem:[%s0 + $0x30] sm:$0xff]
    %v28 = vld [vmem:[%s0 + $0x38] sm:$0xff]
    %v29 = vld [vmem:[%s1] sm:$0xff]
    %v30 = vld [vmem:[%s1 + $0x8] sm:$0xff]
    %v31 = vld [vmem:[%s1 + $0x10] sm:$0xff]
    %v32 = vld [vmem:[%s1 + $0x18] sm:$0xff]
    %v33 = vld [vmem:[%s1 + $0x20] sm:$0xff]
    %v34 = vld [vmem:[%s1 + $0x28] sm:$0xff]
    %v35 = vld [vmem:[%s1 + $0x30] sm:$0xff]
    %v36 = vld [vmem:[%s1 + $0x38] sm:$0xff]
    %v37 = vld [vmem:[%s1 + $0x40] sm:$0xff]
    %v38 = vld [vmem:[%s1 + $0x48] sm:$0xff]
    %v39 = vld [vmem:[%s1 + $0x50] sm:$0xff]
    %v40 = vld [vmem:[%s1 + $0x58] sm:$0xff]
    %v41 = vld [vmem:[%s1 + $0x60] sm:$0xff]
    %v42 = vld [vmem:[%s1 + $0x68] sm:$0xff]
    %v43 = vld [vmem:[%s1 + $0x70] sm:$0xff]
    %v44 = vld [vmem:[%s1 + $0x78] sm:$0xff]
    %v45 = vld [vmem:[%s1 + $0x80] sm:$0xff]
    %v46 = vld [vmem:[%s1 + $0x88] sm:$0xff]
    %v47 = vld [vmem:[%s1 + $0x90] sm:$0xff]
    %v48 = vld [vmem:[%s1 + $0x98] sm:$0xff]
    %v49 = vld [vmem:[%s1 + $0xa0] sm:$0xff]
    %v50 = vld [vmem:[%s1 + $0xa8] sm:$0xff]
    %v51 = vld [vmem:[%s1 + $0xb0] sm:$0xff]
    %v52 = vld [vmem:[%s1 + $0xb8] sm:$0xff]
    %v53 = vld [vmem:[%s1 + $0xc0] sm:$0xff]
    %v54 = vld [vmem:[%s1 + $0xc8] sm:$0xff]
    %v55 = vld [vmem:[%s1 + $0xd0] sm:$0xff]
    %v56 = vld [vmem:[%s1 + $0xd8] sm:$0xff]
    %v57 = vld [vmem:[%s1 + $0xe0] sm:$0xff]
    %v58 = vld [vmem:[%s1 + $0xe8] sm:$0xff]
    %v59 = vld [vmem:[%s1 + $0xf0] sm:$0xff]
    %v60 = vld [vmem:[%s1 + $0xf8] sm:$0xff]
    %v61 = vld [vmem:[%s1 + $0x100] sm:$0xff]
    %v62 = vld [vmem:[%s1 + $0x108] sm:$0xff]
    %v63 = vld [vmem:[%s1 + $0x110] sm:$0xff]
    %v64 = vld [vmem:[%s1 + $0x118] sm:$0xff]
    %v65 = vld [vmem:[%s1 + $0x120] sm:$0xff]
    %v66 = vld [vmem:[%s1 + $0x128] sm:$0xff]
    %v67 = vld [vmem:[%s1 + $0x130] sm:$0xff]
    %v68 = vld [vmem:[%s1 + $0x138] sm:$0xff]
    %v69 = vld [vmem:[%s1 + $0x140] sm:$0xff]
    %v70 = vld [vmem:[%s1 + $0x148] sm:$0xff]
    %v71 = vld [vmem:[%s1 + $0x150] sm:$0xff]
    %v72 = vld [vmem:[%s1 + $0x158] sm:$0xff]
    %v73 = vld [vmem:[%s1 + $0x160] sm:$0xff]
    %v74 = vld [vmem:[%s1 + $0x168] sm:$0xff]
    %v75 = vld [vmem:[%s1 + $0x170] sm:$0xff]
    %v76 = vld [vmem:[%s1 + $0x178] sm:$0xff]
    %v77 = vld [vmem:[%s1 + $0x180] sm:$0xff]
    %v78 = vld [vmem:[%s1 + $0x188] sm:$0xff]
    %v79 = vld [vmem:[%s1 + $0x190] sm:$0xff]
    %v80 = vld [vmem:[%s1 + $0x198] sm:$0xff]
    %v81 = vld [vmem:[%s1 + $0x1a0] sm:$0xff]
    %v82 = vld [vmem:[%s1 + $0x1a8] sm:$0xff]
    %v83 = vld [vmem:[%s1 + $0x1b0] sm:$0xff]
    %v84 = vld [vmem:[%s1 + $0x1b8] sm:$0xff]
    %v85 = vld [vmem:[%s1 + $0x1c0] sm:$0xff]
    %v86 = vld [vmem:[%s1 + $0x1c8] sm:$0xff]
    %v87 = vld [vmem:[%s1 + $0x1d0] sm:$0xff]
    %v88 = vld [vmem:[%s1 + $0x1d8] sm:$0xff]
    %v89 = vld [vmem:[%s1 + $0x1e0] sm:$0xff]
    %v90 = vld [vmem:[%s1 + $0x1e8] sm:$0xff]
    %v91 = vld [vmem:[%s1 + $0x1f0] sm:$0xff]
    %v92 = vld [vmem:[%s1 + $0x1f8] sm:$0xff]
    %v93 = vld [vmem:[%s1 + $0x200] sm:$0xff]
    %v94 = vld [vmem:[%s1 + $0x208] sm:$0xff]
    %v95 = vld [vmem:[%s1 + $0x210] sm:$0xff]
    %v96 = vld [vmem:[%s1 + $0x218] sm:$0xff]
    %v97 = vld [vmem:[%s1 + $0x220] sm:$0xff]
    %v98 = vld [vmem:[%s1 + $0x228] sm:$0xff]
    %v99 = vld [vmem:[%s1 + $0x230] sm:$0xff]
    %v100 = vld [vmem:[%s1 + $0x238] sm:$0xff]
    %v101 = vld [vmem:[%s1 + $0x240] sm:$0xff]
    %v102 = vld [vmem:[%s1 + $0x248] sm:$0xff]
    %v103 = vld [vmem:[%s1 + $0x250] sm:$0xff]
    %v104 = vld [vmem:[%s1 + $0x258] sm:$0xff]
    %v105 = vld [vmem:[%s1 + $0x260] sm:$0xff]
    %v106 = vld [vmem:[%s1 + $0x268] sm:$0xff]
    %v107 = vld [vmem:[%s1 + $0x270] sm:$0xff]
    %v108 = vld [vmem:[%s1 + $0x278] sm:$0xff]
    %v109 = vld [vmem:[%s1 + $0x280] sm:$0xff]
    %v110 = vld [vmem:[%s1 + $0x288] sm:$0xff]
    %v111 = vld [vmem:[%s1 + $0x290] sm:$0xff]
    %v112 = vld [vmem:[%s1 + $0x298] sm:$0xff]
    %v113 = vld [vmem:[%s1 + $0x2a0] sm:$0xff]
    %v114 = vld [vmem:[%s1 + $0x2a8] sm:$0xff]
    %v115 = vld [vmem:[%s1 + $0x2b0] sm:$0xff]
    %v116 = vld [vmem:[%s1 + $0x2b8] sm:$0xff]
    %v117 = vld [vmem:[%s1 + $0x2c0] sm:$0xff]
    %v118 = vld [vmem:[%s1 + $0x2c8] sm:$0xff]
    %v119 = vld [vmem:[%s1 + $0x2d0] sm:$0xff]
    %v120 = vld [vmem:[%s1 + $0x2d8] sm:$0xff]
    %v121 = vld [vmem:[%s1 + $0x2e0] sm:$0xff]
    %v122 = vld [vmem:[%s1 + $0x2e8] sm:$0xff]
    %v123 = vld [vmem:[%s1 + $0x2f0] sm:$0xff]
    %v124 = vld [vmem:[%s1 + $0x2f8] sm:$0xff]
    %v125 = vld [vmem:[%s1 + $0x300] sm:$0xff]
    %v126 = vld [vmem:[%s1 + $0x308] sm:$0xff]
    %v127 = vld [vmem:[%s1 + $0x310] sm:$0xff]
    %v128 = vld [vmem:[%s1 + $0x318] sm:$0xff]
    %v129 = vld [vmem:[%s1 + $0x320] sm:$0xff]
    %v130 = vld [vmem:[%s1 + $0x328] sm:$0xff]
    %v131 = vld [vmem:[%s1 + $0x330] sm:$0xff]
    %v132 = vld [vmem:[%s1 + $0x338] sm:$0xff]
    %v133 = vld [vmem:[%s1 + $0x340] sm:$0xff]
    %v134 = vld [vmem:[%s1 + $0x348] sm:$0xff]
    %v135 = vld [vmem:[%s1 + $0x350] sm:$0xff]
    %v136 = vld [vmem:[%s1 + $0x358] sm:$0xff]
    %v137 = vld [vmem:[%s1 + $0x360] sm:$0xff]
    %v138 = vld [vmem:[%s1 + $0x368] sm:$0xff]
    %v139 = vld [vmem:[%s1 + $0x370] sm:$0xff]
    %v140 = vld [vmem:[%s1 + $0x378] sm:$0xff]
    %v141 = vld [vmem:[%s1 + $0x380] sm:$0xff]
    %v142 = vld [vmem:[%s1 + $0x388] sm:$0xff]
    %v143 = vld [vmem:[%s1 + $0x390] sm:$0xff]
    %v144 = vld [vmem:[%s1 + $0x398] sm:$0xff]
    %v145 = vld [vmem:[%s1 + $0x3a0] sm:$0xff]
    %v146 = vld [vmem:[%s1 + $0x3a8] sm:$0xff]
    %v147 = vld [vmem:[%s1 + $0x3b0] sm:$0xff]
    %v148 = vld [vmem:[%s1 + $0x3b8] sm:$0xff]
    %v149 = vld [vmem:[%s1 + $0x3c0] sm:$0xff]
    %v150 = vld [vmem:[%s1 + $0x3c8] sm:$0xff]
    %v151 = vld [vmem:[%s1 + $0x3d0] sm:$0xff]
    %v152 = vld [vmem:[%s1 + $0x3d8] sm:$0xff]
    %v153 = vld [vmem:[%s1 + $0x3e0] sm:$0xff]
    %v154 = vld [vmem:[%s1 + $0x3e8] sm:$0xff]
    %v155 = vld [vmem:[%s1 + $0x3f0] sm:$0xff]
    %v156 = vld [vmem:[%s1 + $0x3f8] sm:$0xff]
    %v157 = vld [vmem:[%s2] sm:$0x3]
    %v159 = vperm.slane %v157, 0
    %v160 = vperm.slane %v157, 1
    %163 = vmatpush.msra.mxu0 %v59
    %164 = vmatpush.msra.mxu0 %v57
    %165 = vmatpush.msra.mxu0 %v55
    %166 = vmatpush.msra.mxu0 %v53
    %167 = vmatpush.msra.mxu0 %v51
    %168 = vmatpush.msra.mxu0 %v49
    %169 = vmatpush.msra.mxu0 %v47
    %170 = vmatpush.msra.mxu0 %v45
    %171 = vmatpush.msra.mxu0 %v43
    %172 = vmatpush.msra.mxu0 %v41
    %173 = vmatpush.msra.mxu0 %v39
    %174 = vmatpush.msra.mxu0 %v37
    %175 = vmatpush.msra.mxu0 %v35
    %176 = vmatpush.msra.mxu0 %v33
    %177 = vmatpush.msra.mxu0 %v31
    %178 = vmatpush.msra.mxu0 %v29
    %179 = vmatmul.f32.gmra.mxu0 %v21
    %v180 = vpop.f32.mrf.mxu0
    %v181 = vadd.f32 %v159, %v180
    %182 = vmatmul.f32.gmra.mxu0 %v25
    %v183 = vpop.f32.mrf.mxu0
    %v184 = vadd.f32 %v159, %v183
    %185 = vdwg.mxu0
    %186 = vmatpush.msra.mxu0 %v91
    %187 = vmatpush.msra.mxu0 %v89
    %188 = vmatpush.msra.mxu0 %v87
    %189 = vmatpush.msra.mxu0 %v85
    %190 = vmatpush.msra.mxu0 %v83
    %191 = vmatpush.msra.mxu0 %v81
    %192 = vmatpush.msra.mxu0 %v79
    %193 = vmatpush.msra.mxu0 %v77
    %194 = vmatpush.msra.mxu0 %v75
    %195 = vmatpush.msra.mxu0 %v73
    %196 = vmatpush.msra.mxu0 %v71
    %197 = vmatpush.msra.mxu0 %v69
    %198 = vmatpush.msra.mxu0 %v67
    %199 = vmatpush.msra.mxu0 %v65
    %200 = vmatpush.msra.mxu0 %v63
    %201 = vmatpush.msra.mxu0 %v61
    %202 = vmatmul.f32.gmra.mxu0 %v22
    %v203 = vpop.f32.mrf.mxu0
    %v204 = vadd.f32 %v181, %v203
    %205 = vmatmul.f32.gmra.mxu0 %v26
    %v206 = vpop.f32.mrf.mxu0
    %v207 = vadd.f32 %v184, %v206
    %208 = vdwg.mxu0
    %209 = vmatpush.msra.mxu0 %v123
    %210 = vmatpush.msra.mxu0 %v121
    %211 = vmatpush.msra.mxu0 %v119
    %212 = vmatpush.msra.mxu0 %v117
    %213 = vmatpush.msra.mxu0 %v115
    %214 = vmatpush.msra.mxu0 %v113
    %215 = vmatpush.msra.mxu0 %v111
    %216 = vmatpush.msra.mxu0 %v109
    %217 = vmatpush.msra.mxu0 %v107
    %218 = vmatpush.msra.mxu0 %v105
    %219 = vmatpush.msra.mxu0 %v103
    %220 = vmatpush.msra.mxu0 %v101
    %221 = vmatpush.msra.mxu0 %v99
    %222 = vmatpush.msra.mxu0 %v97
    %223 = vmatpush.msra.mxu0 %v95
    %224 = vmatpush.msra.mxu0 %v93
    %225 = vmatmul.f32.gmra.mxu0 %v23
    %v226 = vpop.f32.mrf.mxu0
    %v227 = vadd.f32 %v204, %v226
    %228 = vmatmul.f32.gmra.mxu0 %v27
    %v229 = vpop.f32.mrf.mxu0
    %v230 = vadd.f32 %v207, %v229
    %231 = vdwg.mxu0
    %232 = vmatpush.msra.mxu0 %v155
    %233 = vmatpush.msra.mxu0 %v153
    %234 = vmatpush.msra.mxu0 %v151
    %235 = vmatpush.msra.mxu0 %v149
    %236 = vmatpush.msra.mxu0 %v147
    %237 = vmatpush.msra.mxu0 %v145
    %238 = vmatpush.msra.mxu0 %v143
    %239 = vmatpush.msra.mxu0 %v141
    %240 = vmatpush.msra.mxu0 %v139
    %241 = vmatpush.msra.mxu0 %v137
    %242 = vmatpush.msra.mxu0 %v135
    %243 = vmatpush.msra.mxu0 %v133
    %244 = vmatpush.msra.mxu0 %v131
    %245 = vmatpush.msra.mxu0 %v129
    %246 = vmatpush.msra.mxu0 %v127
    %247 = vmatpush.msra.mxu0 %v125
    %248 = vmatmul.f32.gmra.mxu0 %v24
    %v249 = vpop.f32.mrf.mxu0
    %v250 = vadd.f32 %v227, %v249
    %251 = vmatmul.f32.gmra.mxu0 %v28
    %v252 = vpop.f32.mrf.mxu0
    %v253 = vadd.f32 %v230, %v252
    %254 = vdwg.mxu0
    %255 = vmatpush.msra.mxu0 %v60
    %256 = vmatpush.msra.mxu0 %v58
    %257 = vmatpush.msra.mxu0 %v56
    %258 = vmatpush.msra.mxu0 %v54
    %259 = vmatpush.msra.mxu0 %v52
    %260 = vmatpush.msra.mxu0 %v50
    %261 = vmatpush.msra.mxu0 %v48
    %262 = vmatpush.msra.mxu0 %v46
    %263 = vmatpush.msra.mxu0 %v44
    %264 = vmatpush.msra.mxu0 %v42
    %265 = vmatpush.msra.mxu0 %v40
    %266 = vmatpush.msra.mxu0 %v38
    %267 = vmatpush.msra.mxu0 %v36
    %268 = vmatpush.msra.mxu0 %v34
    %269 = vmatpush.msra.mxu0 %v32
    %270 = vmatpush.msra.mxu0 %v30
    %271 = vmatmul.f32.gmra.mxu0 %v21
    %v272 = vpop.f32.mrf.mxu0
    %v273 = vadd.f32 %v160, %v272
    %274 = vmatmul.f32.gmra.mxu0 %v25
    %v275 = vpop.f32.mrf.mxu0
    %v276 = vadd.f32 %v160, %v275
    %277 = vdwg.mxu0
    %278 = vmatpush.msra.mxu0 %v92
    %279 = vmatpush.msra.mxu0 %v90
    %280 = vmatpush.msra.mxu0 %v88
    %281 = vmatpush.msra.mxu0 %v86
    %282 = vmatpush.msra.mxu0 %v84
    %283 = vmatpush.msra.mxu0 %v82
    %284 = vmatpush.msra.mxu0 %v80
    %285 = vmatpush.msra.mxu0 %v78
    %286 = vmatpush.msra.mxu0 %v76
    %287 = vmatpush.msra.mxu0 %v74
    %288 = vmatpush.msra.mxu0 %v72
    %289 = vmatpush.msra.mxu0 %v70
    %290 = vmatpush.msra.mxu0 %v68
    %291 = vmatpush.msra.mxu0 %v66
    %292 = vmatpush.msra.mxu0 %v64
    %293 = vmatpush.msra.mxu0 %v62
    %294 = vmatmul.f32.gmra.mxu0 %v22
    %v295 = vpop.f32.mrf.mxu0
    %v296 = vadd.f32 %v273, %v295
    %297 = vmatmul.f32.gmra.mxu0 %v26
    %v298 = vpop.f32.mrf.mxu0
    %v299 = vadd.f32 %v276, %v298
    %300 = vdwg.mxu0
    %301 = vmatpush.msra.mxu0 %v124
    %302 = vmatpush.msra.mxu0 %v122
    %303 = vmatpush.msra.mxu0 %v120
    %304 = vmatpush.msra.mxu0 %v118
    %305 = vmatpush.msra.mxu0 %v116
    %306 = vmatpush.msra.mxu0 %v114
    %307 = vmatpush.msra.mxu0 %v112
    %308 = vmatpush.msra.mxu0 %v110
    %309 = vmatpush.msra.mxu0 %v108
    %310 = vmatpush.msra.mxu0 %v106
    %311 = vmatpush.msra.mxu0 %v104
    %312 = vmatpush.msra.mxu0 %v102
    %313 = vmatpush.msra.mxu0 %v100
    %314 = vmatpush.msra.mxu0 %v98
    %315 = vmatpush.msra.mxu0 %v96
    %316 = vmatpush.msra.mxu0 %v94
    %317 = vmatmul.f32.gmra.mxu0 %v23
    %v318 = vpop.f32.mrf.mxu0
    %v319 = vadd.f32 %v296, %v318
    %320 = vmatmul.f32.gmra.mxu0 %v27
    %v321 = vpop.f32.mrf.mxu0
    %v322 = vadd.f32 %v299, %v321
    %323 = vdwg.mxu0
    %324 = vmatpush.msra.mxu0 %v156
    %325 = vmatpush.msra.mxu0 %v154
    %326 = vmatpush.msra.mxu0 %v152
    %327 = vmatpush.msra.mxu0 %v150
    %328 = vmatpush.msra.mxu0 %v148
    %329 = vmatpush.msra.mxu0 %v146
    %330 = vmatpush.msra.mxu0 %v144
    %331 = vmatpush.msra.mxu0 %v142
    %332 = vmatpush.msra.mxu0 %v140
    %333 = vmatpush.msra.mxu0 %v138
    %334 = vmatpush.msra.mxu0 %v136
    %335 = vmatpush.msra.mxu0 %v134
    %336 = vmatpush.msra.mxu0 %v132
    %337 = vmatpush.msra.mxu0 %v130
    %338 = vmatpush.msra.mxu0 %v128
    %339 = vmatpush.msra.mxu0 %v126
    %340 = vmatmul.f32.gmra.mxu0 %v24
    %v341 = vpop.f32.mrf.mxu0
    %v342 = vadd.f32 %v319, %v341
    %343 = vmatmul.f32.gmra.mxu0 %v28
    %v344 = vpop.f32.mrf.mxu0
    %v345 = vadd.f32 %v322, %v344
    %346 = vdwg.mxu0
    %v347 = vmax.f32 %v250, 0.0
    %v348 = vmax.f32 %v342, 0.0
    %v349 = vmax.f32 %v253, 0.0
    %v350 = vmax.f32 %v345, 0.0
    %v351 = vld [vmem:[%s3] sm:$0xff]
    %v352 = vld [vmem:[%s3 + $0x8] sm:$0xff]
    %v353 = vld [vmem:[%s3 + $0x10] sm:$0xff]
    %v354 = vld [vmem:[%s3 + $0x18] sm:$0xff]
    %v355 = vld [vmem:[%s3 + $0x20] sm:$0xff]
    %v356 = vld [vmem:[%s3 + $0x28] sm:$0xff]
    %v357 = vld [vmem:[%s3 + $0x30] sm:$0xff]
    %v358 = vld [vmem:[%s3 + $0x38] sm:$0xff]
    %v359 = vld [vmem:[%s3 + $0x40] sm:$0xff]
    %v360 = vld [vmem:[%s3 + $0x48] sm:$0xff]
    %v361 = vld [vmem:[%s3 + $0x50] sm:$0xff]
    %v362 = vld [vmem:[%s3 + $0x58] sm:$0xff]
    %v363 = vld [vmem:[%s3 + $0x60] sm:$0xff]
    %v364 = vld [vmem:[%s3 + $0x68] sm:$0xff]
    %v365 = vld [vmem:[%s3 + $0x70] sm:$0xff]
    %v366 = vld [vmem:[%s3 + $0x78] sm:$0xff]
    %v367 = vld [vmem:[%s3 + $0x80] sm:$0xff]
    %v368 = vld [vmem:[%s3 + $0x88] sm:$0xff]
    %v369 = vld [vmem:[%s3 + $0x90] sm:$0xff]
    %v370 = vld [vmem:[%s3 + $0x98] sm:$0xff]
    %v371 = vld [vmem:[%s3 + $0xa0] sm:$0xff]
    %v372 = vld [vmem:[%s3 + $0xa8] sm:$0xff]
    %v373 = vld [vmem:[%s3 + $0xb0] sm:$0xff]
    %v374 = vld [vmem:[%s3 + $0xb8] sm:$0xff]
    %v375 = vld [vmem:[%s3 + $0xc0] sm:$0xff]
    %v376 = vld [vmem:[%s3 + $0xc8] sm:$0xff]
    %v377 = vld [vmem:[%s3 + $0xd0] sm:$0xff]
    %v378 = vld [vmem:[%s3 + $0xd8] sm:$0xff]
    %v379 = vld [vmem:[%s3 + $0xe0] sm:$0xff]
    %v380 = vld [vmem:[%s3 + $0xe8] sm:$0xff]
    %v381 = vld [vmem:[%s3 + $0xf0] sm:$0xff]
    %v382 = vld [vmem:[%s3 + $0xf8] sm:$0xff]
    %v383 = vld [vmem:[%s4] sm:$0x1]
    %v385 = vperm.slane %v383, 0
    %387 = vmatpush.msra.mxu0 %v366
    %388 = vmatpush.msra.mxu0 %v365
    %389 = vmatpush.msra.mxu0 %v364
    %390 = vmatpush.msra.mxu0 %v363
    %391 = vmatpush.msra.mxu0 %v362
    %392 = vmatpush.msra.mxu0 %v361
    %393 = vmatpush.msra.mxu0 %v360
    %394 = vmatpush.msra.mxu0 %v359
    %395 = vmatpush.msra.mxu0 %v358
    %396 = vmatpush.msra.mxu0 %v357
    %397 = vmatpush.msra.mxu0 %v356
    %398 = vmatpush.msra.mxu0 %v355
    %399 = vmatpush.msra.mxu0 %v354
    %400 = vmatpush.msra.mxu0 %v353
    %401 = vmatpush.msra.mxu0 %v352
    %402 = vmatpush.msra.mxu0 %v351
    %403 = vmatmul.f32.gmra.mxu0 %v347
    %v404 = vpop.f32.mrf.mxu0
    %v405 = vadd.f32 %v385, %v404
    %406 = vmatmul.f32.gmra.mxu0 %v349
    %v407 = vpop.f32.mrf.mxu0
    %v408 = vadd.f32 %v385, %v407
    %409 = vdwg.mxu0
    %410 = vmatpush.msra.mxu0 %v382
    %411 = vmatpush.msra.mxu0 %v381
    %412 = vmatpush.msra.mxu0 %v380
    %413 = vmatpush.msra.mxu0 %v379
    %414 = vmatpush.msra.mxu0 %v378
    %415 = vmatpush.msra.mxu0 %v377
    %416 = vmatpush.msra.mxu0 %v376
    %417 = vmatpush.msra.mxu0 %v375
    %418 = vmatpush.msra.mxu0 %v374
    %419 = vmatpush.msra.mxu0 %v373
    %420 = vmatpush.msra.mxu0 %v372
    %421 = vmatpush.msra.mxu0 %v371
    %422 = vmatpush.msra.mxu0 %v370
    %423 = vmatpush.msra.mxu0 %v369
    %424 = vmatpush.msra.mxu0 %v368
    %425 = vmatpush.msra.mxu0 %v367
    %426 = vmatmul.f32.gmra.mxu0 %v348
    %v427 = vpop.f32.mrf.mxu0
    %v428 = vadd.f32 %v405, %v427
    %429 = vmatmul.f32.gmra.mxu0 %v350
    %v430 = vpop.f32.mrf.mxu0
    %v431 = vadd.f32 %v408, %v430
    %432 = vdwg.mxu0
    %433 = vst [vmem:[#allocation2] sm:$0xff] %v428
    %434 = vst [vmem:[#allocation2 + $0x8] sm:$0xff] %v431
    // Predicated region
    $region22: #{qnetwork_forward.1} parent=1 // pred_check
      _
    $region23: #{qnetwork_forward.1} parent=1 // pred_check_branch
      %436 = sbr.rel (0) target = $region25
    $region24: #{qnetwork_forward.1} parent=1 // pred_region
      %438 = vsyncadd [#allocation3], 0
      %s439 = sshll.u32 [#allocation2], 4
      %s440 = int_to_ptr.vmem [resolvable:$true] %s439
      %s441 = sshll.u32 %s5, 4
      %s442 = int_to_ptr.hbm [resolvable:$true] %s441
      %447 = dma.vmem_to_hbm [thread:$0]  %s440, 256, %s442, [#allocation3], 128, 128, 8
    $region25: #{qnetwork_forward.1} parent=1 // pred_fallthru
      _
    // Predicated region
    $region26: #{qnetwork_forward.1} parent=1 // pred_check
      _
    $region27: #{qnetwork_forward.1} parent=1 // pred_check_branch
      %449 = sbr.rel (0) target = $region29
    $region28: #{qnetwork_forward.1} parent=1 // pred_region
      %451 = dma.done [#allocation3], 256
    $region29: #{qnetwork_forward.1} parent=1 // pred_fallthru
      _
    %452 = vsyncpa [#allocation3], 1

</llo_original>
